<compile_context>
chip_gen: v7x
topology: tpu7x:2x2x1
jax: 0.10.0
libtpu: 0.0.40
codegen_flags: <defaults>
</compile_context>

<pallas_src>
import jax
import jax.numpy as jnp
from jax.experimental import pallas as pl
from jax.experimental.pallas import tpu as pltpu


_CHUNK = 128   # rows of the batch tile processed per inner-loop iteration


def _round_up(n, m):
    return ((n + m - 1) // m) * m


def _vmem_capacity_bytes():
    try:
        return int(pltpu.get_tpu_info().vmem_capacity_bytes)
    except Exception:
        return 64 * 1024 * 1024     # conservative (v7x per-core VMEM)


def _choose_block_b(B, S, H):
    """Batch rows per grid step.

    Targets a multi-MiB x tile (past the ~85%-of-roofline knee) while keeping
    the double-buffered pipeline footprint (x tile + lane-padded out/attn
    blocks) to ~1/3 of this generation's VMEM, and keeping >= 2 grid steps
    when B allows so the batch axis can shard across TensorCores.
    """
    row_bytes = S * H * 4
    vmem_cap = _vmem_capacity_bytes()
    # Double-buffered bytes per batch row: x tile plus the out/attn blocks,
    # whose last dims (H, S) are lane-padded to 128 inside VMEM.
    per_row = 2 * row_bytes + 2 * 4 * (_round_up(H, 128) + _round_up(S, 128))
    tb = (vmem_cap // 3) // per_row
    tb = min(tb, (8 << 20) // row_bytes)      # ~8 MiB x tile is plenty
    tb = min(tb, _round_up(B, 8))             # don't pad far past B
    if B >= 16:                               # keep >= 2 grid steps (megacore)
        tb = min(tb, _round_up(-(-B // 2), 8))
    if tb >= _CHUNK:
        tb = (tb // _CHUNK) * _CHUNK          # inner chunk loop divides evenly
    else:
        tb = max(8, (tb // 8) * 8)
    return tb


def _attention_kernel(x_ref, w1_ref, b1_ref, w2_ref, b2_ref, out_ref, attn_ref):
    # x_ref block: (TB, S, H); w1 (H, D); b1 (1, D); w2 (1, D); b2 (1,) in SMEM.
    TB, S, H = x_ref.shape
    D = w1_ref.shape[1]
    CB = min(TB, _CHUNK)
    n_chunks = TB // CB                       # static

    # Weights are tiny; hoist the loads out of the chunk loop (resident vregs).
    w1 = w1_ref[...]                          # (H, D)
    b1 = b1_ref[...]                          # (1, D)
    w2 = w2_ref[...]                          # (1, D)
    b2 = b2_ref[0]                            # scalar bias from SMEM

    @pl.loop(0, n_chunks)
    def _(c):
        off = pl.multiple_of(c * CB, CB)

        # ---- Linear(H -> D) + ReLU: one (CB*S, H) x (H, D) MXU matmul ----
        # (CB,S,H)->(CB*S,H) is a free leading-dim merge when S % 8 == 0.
        xs = x_ref[pl.ds(off, CB)]            # (CB, S, H)
        h = jnp.dot(xs.reshape(CB * S, H), w1,
                    preferred_element_type=jnp.float32)
        h = jnp.maximum(h + b1, 0.0)          # (CB*S, D)

        # ---- Linear(D -> 1): VPU broadcast-multiply + lane reduce ----
        # (skips an almost-empty MXU pass for the 1-wide output)
        s = jnp.sum(h.reshape(CB, S, D) * w2, axis=-1) + b2   # (CB, S)

        # ---- softmax over S (lane-axis reductions, exact normalisation) ----
        m = jnp.max(s, axis=-1, keepdims=True)                # (CB, 1)
        p = jnp.exp(s - m)                                    # EUP
        attn = p / jnp.sum(p, axis=-1, keepdims=True)         # rows sum to 1

        # ---- weighted sum over S: out[b] = sum_s attn[b,s] * x[b,s,:] ----
        # Re-read the chunk from VMEM instead of keeping it live across the
        # matmul/softmax (low vreg pressure; VMEM loads are cheap).
        xw = x_ref[pl.ds(off, CB)]
        out = jnp.sum(attn[:, :, None] * xw, axis=1)          # (CB, H)

        out_ref[pl.ds(off, CB), :] = out.astype(out_ref.dtype)
        attn_ref[pl.ds(off, CB), :] = attn.astype(attn_ref.dtype)


def attention_forward(x, w1, b1, w2, b2, *, block_b=None):
    """x: [B, S, H] f32.  Returns (output [B, H], attn [B, S])."""
    B, S, H = x.shape
    D = w1.shape[1]  # 64
    assert w1.shape == (H, D) and w2.shape == (D, 1)

    TB = block_b if block_b is not None else _choose_block_b(B, S, H)
    B_pad = _round_up(B, TB)
    x_in = jnp.pad(x, ((0, B_pad - B), (0, 0), (0, 0))) if B_pad != B else x

    b1_2d = b1.reshape(1, D)
    w2_row = w2.reshape(1, D)      # row layout for the VPU broadcast-multiply
    b2_1d = b2.reshape(1)          # scalar -> SMEM

    out_shape = (
        jax.ShapeDtypeStruct((B_pad, H), x.dtype),
        jax.ShapeDtypeStruct((B_pad, S), x.dtype),
    )

    grid_spec = pltpu.PrefetchScalarGridSpec(
        num_scalar_prefetch=0,
        grid=(B_pad // TB,),
        in_specs=[
            pl.BlockSpec((TB, S, H), lambda i: (i, 0, 0)),        # x tile
            pl.BlockSpec((H, D), lambda i: (0, 0)),               # w1 (resident)
            pl.BlockSpec((1, D), lambda i: (0, 0)),               # b1
            pl.BlockSpec((1, D), lambda i: (0, 0)),               # w2 row
            pl.BlockSpec(memory_space=pltpu.MemorySpace.SMEM),    # b2 scalar
        ],
        out_specs=[
            pl.BlockSpec((TB, H), lambda i: (i, 0)),              # output rows
            pl.BlockSpec((TB, S), lambda i: (i, 0)),              # attn rows
        ],
    )

    # Pipelined VMEM: double-buffered x tile + double-buffered output blocks
    # (their last dims are lane-padded to 128 in VMEM) + resident weights,
    # plus headroom for compiler scratch.  Explicit so v5e's 16 MiB scoped
    # default never truncates the pipeline.
    pipelined = TB * (2 * S * H * 4
                      + 2 * 4 * (_round_up(H, 128) + _round_up(S, 128)))
    weights = (H * D + 2 * D) * 4
    vmem_limit = int(min(_vmem_capacity_bytes(),
                         max(pipelined + weights + (8 << 20), 32 << 20)))

    out, attn = pl.pallas_call(
        _attention_kernel,
        out_shape=out_shape,
        grid_spec=grid_spec,
        compiler_params=pltpu.CompilerParams(
            dimension_semantics=("parallel",),   # batch axis shards across TCs
            vmem_limit_bytes=vmem_limit),
    )(x_in, w1, b1_2d, w2_row, b2_1d)

    return out[:B], attn[:B]


def _reference(x, w1, b1, w2, b2):
    # plain-JAX reference mirroring the PyTorch forward
    h = jnp.maximum(jnp.einsum("bsh,hd->bsd", x, w1) + b1, 0.0)
    s = jnp.einsum("bsd,do->bso", h, w2) + b2          # (B, S, 1)
    B, S, _ = s.shape
    attn = jax.nn.softmax(s.reshape(-1, S), axis=1).reshape(B, 1, S)
    out = jnp.einsum("bos,bsh->boh", attn, x)
    return jnp.squeeze(out, 1), jnp.squeeze(attn, 1)


if __name__ == "__main__":
    # Small shapes consistent with the module: batch=2, input_size(seq)=8,
    # hidden (input_Dim)=32, attention hidden output_Dim=64.
    B, S, H, D = 2, 8, 32, 64

    key = jax.random.PRNGKey(0)
    kx, kw1, kb1, kw2, kb2 = jax.random.split(key, 5)

    x = jax.random.normal(kx, (B, S, H), dtype=jnp.float32)

    # Deterministic parameter init (PyTorch-Linear-like uniform ranges).
    lim1 = 1.0 / jnp.sqrt(jnp.float32(H))
    lim2 = 1.0 / jnp.sqrt(jnp.float32(D))
    w1 = jax.random.uniform(kw1, (H, D), jnp.float32, -lim1, lim1)
    b1 = jax.random.uniform(kb1, (D,), jnp.float32, -lim1, lim1)
    w2 = jax.random.uniform(kw2, (D, 1), jnp.float32, -lim2, lim2)
    b2 = jax.random.uniform(kb2, (1,), jnp.float32, -lim2, lim2)

    out, attn = attention_forward(x, w1, b1, w2, b2)
    out = jax.block_until_ready(out)
    attn = jax.block_until_ready(attn)

    ref_out, ref_attn = _reference(x, w1, b1, w2, b2)
    # Tolerance covers MXU default-precision differences between the kernel's
    # f32 VPU Linear2 and the reference's MXU einsum (softmax is now exactly
    # normalised in the kernel).
    assert jnp.allclose(out, ref_out, atol=2e-3, rtol=2e-3), "output mismatch"
    assert jnp.allclose(attn, ref_attn, atol=2e-3, rtol=2e-3), "attn mismatch"

    print("KERNEL_OK")
</pallas_src>

<mosaic_0001>
module attributes {stable_mosaic.version = 11 : i64} {
  func.func @_attention_kernel(%arg0: i32, %arg1: memref<8x8x32xf32, #tpu.memory_space<vmem>>, %arg2: memref<32x64xf32, #tpu.memory_space<vmem>>, %arg3: memref<1x64xf32, #tpu.memory_space<vmem>>, %arg4: memref<1x64xf32, #tpu.memory_space<vmem>>, %arg5: memref<1xf32, #tpu.memory_space<smem>>, %arg6: memref<8x32xf32, #tpu.memory_space<vmem>>, %arg7: memref<8x8xf32, #tpu.memory_space<vmem>>) attributes {dimension_semantics = [#tpu.dimension_semantics<parallel>], iteration_bounds = array<i64: 1>, scalar_prefetch = 0 : i64, scratch_operands = 0 : i64, tpu.core_type = #tpu.core_type<tc>, window_params = [{transform_indices = @transform_0, window_bounds = array<i64: 8, 8, 32>}, {pipeline_mode = #tpu.pipeline_mode<synchronous>, transform_indices = @transform_1, window_bounds = array<i64: 32, 64>}, {pipeline_mode = #tpu.pipeline_mode<synchronous>, transform_indices = @transform_2, window_bounds = array<i64: 1, 64>}, {pipeline_mode = #tpu.pipeline_mode<synchronous>, transform_indices = @transform_3, window_bounds = array<i64: 1, 64>}, {transform_indices = @transform_4, window_bounds = array<i64: 1>}, {transform_indices = @transform_5, window_bounds = array<i64: 8, 32>}, {transform_indices = @transform_6, window_bounds = array<i64: 8, 8>}]} {
    %c0 = arith.constant 0 : index
    %c0_0 = arith.constant 0 : index
    %0 = vector.load %arg2[%c0, %c0_0] : memref<32x64xf32, #tpu.memory_space<vmem>>, vector<32x64xf32>
    %c0_1 = arith.constant 0 : index
    %c0_2 = arith.constant 0 : index
    %1 = vector.load %arg3[%c0_1, %c0_2] : memref<1x64xf32, #tpu.memory_space<vmem>>, vector<1x64xf32>
    %c0_3 = arith.constant 0 : index
    %c0_4 = arith.constant 0 : index
    %2 = vector.load %arg4[%c0_3, %c0_4] : memref<1x64xf32, #tpu.memory_space<vmem>>, vector<1x64xf32>
    %c0_5 = arith.constant 0 : index
    %3 = memref.load %arg5[%c0_5] : memref<1xf32, #tpu.memory_space<smem>>
    %c0_i32 = arith.constant 0 : i32
    %c1_i32 = arith.constant 1 : i32
    %4 = arith.muli %c0_i32, %c1_i32 : i32
    %c0_i32_6 = arith.constant 0 : i32
    %5 = arith.addi %c0_i32_6, %4 : i32
    %c8_i32 = arith.constant 8 : i32
    %6 = arith.muli %5, %c8_i32 : i32
    %7 = tpu.assume_multiple %6, 8 : i32
    %8 = arith.index_cast %7 : i32 to index
    %c0_7 = arith.constant 0 : index
    %c0_8 = arith.constant 0 : index
    %9 = vector.load %arg1[%8, %c0_7, %c0_8] : memref<8x8x32xf32, #tpu.memory_space<vmem>>, vector<8x8x32xf32>
    %10 = vector.shape_cast %9 : vector<8x8x32xf32> to vector<64x32xf32>
    %cst = arith.constant dense<0.000000e+00> : vector<64x64xf32>
    %11 = tpu.matmul %10, %0, %cst {dimension_numbers = #tpu.dot_dimension_numbers<[1], [0], [0], [1], [0, 0, 1, 1], [], []>} : vector<64x32xf32>, vector<32x64xf32>, vector<64x64xf32> -> vector<64x64xf32>
    %12 = vector.broadcast %1 : vector<1x64xf32> to vector<64x64xf32>
    %13 = arith.addf %11, %12 : vector<64x64xf32>
    %cst_9 = arith.constant 0.000000e+00 : f32
    %14 = vector.broadcast %cst_9 : f32 to vector<64x64xf32>
    %15 = arith.maximumf %13, %14 : vector<64x64xf32>
    %16 = vector.shape_cast %15 : vector<64x64xf32> to vector<8x8x64xf32>
    %17 = vector.shape_cast %2 : vector<1x64xf32> to vector<1x1x64xf32>
    %18 = vector.broadcast %17 : vector<1x1x64xf32> to vector<8x8x64xf32>
    %19 = arith.mulf %16, %18 : vector<8x8x64xf32>
    %cst_10 = arith.constant dense<0.000000e+00> : vector<8x8xf32>
    %20 = vector.multi_reduction <add>, %19, %cst_10 [2] : vector<8x8x64xf32> to vector<8x8xf32>
    %21 = vector.broadcast %3 : f32 to vector<8x8xf32>
    %22 = arith.addf %20, %21 : vector<8x8xf32>
    %cst_11 = arith.constant dense<0xFF800000> : vector<8xf32>
    %23 = vector.multi_reduction <maximumf>, %22, %cst_11 [1] : vector<8x8xf32> to vector<8xf32>
    %24 = vector.shape_cast %23 : vector<8xf32> to vector<8x1xf32>
    %25 = vector.broadcast %24 : vector<8x1xf32> to vector<8x8xf32>
    %26 = arith.subf %22, %25 : vector<8x8xf32>
    %27 = math.exp %26 : vector<8x8xf32>
    %cst_12 = arith.constant dense<0.000000e+00> : vector<8xf32>
    %28 = vector.multi_reduction <add>, %27, %cst_12 [1] : vector<8x8xf32> to vector<8xf32>
    %29 = vector.shape_cast %28 : vector<8xf32> to vector<8x1xf32>
    %30 = vector.broadcast %29 : vector<8x1xf32> to vector<8x8xf32>
    %31 = arith.divf %27, %30 : vector<8x8xf32>
    %32 = arith.index_cast %7 : i32 to index
    %c0_13 = arith.constant 0 : index
    %c0_14 = arith.constant 0 : index
    %33 = vector.load %arg1[%32, %c0_13, %c0_14] : memref<8x8x32xf32, #tpu.memory_space<vmem>>, vector<8x8x32xf32>
    %34 = vector.shape_cast %31 : vector<8x8xf32> to vector<8x8x1xf32>
    %35 = vector.broadcast %34 : vector<8x8x1xf32> to vector<8x8x32xf32>
    %36 = arith.mulf %35, %33 : vector<8x8x32xf32>
    %cst_15 = arith.constant dense<0.000000e+00> : vector<8x32xf32>
    %37 = vector.multi_reduction <add>, %36, %cst_15 [1] : vector<8x8x32xf32> to vector<8x32xf32>
    %38 = arith.index_cast %7 : i32 to index
    %c0_16 = arith.constant 0 : index
    %39 = vector.load %arg6[%38, %c0_16] : memref<8x32xf32, #tpu.memory_space<vmem>>, vector<8x32xf32>
    tpu.vector_store %arg6[%38, %c0_16], %37 {strides = array<i32>} : memref<8x32xf32, #tpu.memory_space<vmem>>, vector<8x32xf32>,
    %40 = arith.index_cast %7 : i32 to index
    %c0_17 = arith.constant 0 : index
    %41 = vector.load %arg7[%40, %c0_17] : memref<8x8xf32, #tpu.memory_space<vmem>>, vector<8x8xf32>
    tpu.vector_store %arg7[%40, %c0_17], %31 {strides = array<i32>} : memref<8x8xf32, #tpu.memory_space<vmem>>, vector<8x8xf32>,
    %c1_i32_18 = arith.constant 1 : i32
    return
  }
  func.func @transform_0(%arg0: i32) -> (i32, i32, i32) {
    %c0_i32 = arith.constant 0 : i32
    %c0_i32_0 = arith.constant 0 : i32
    %c0_i32_1 = arith.constant 0 : i32
    return %arg0, %c0_i32, %c0_i32_0 : i32, i32, i32
  }
  func.func @transform_1(%arg0: i32) -> (i32, i32) {
    %c0_i32 = arith.constant 0 : i32
    %c0_i32_0 = arith.constant 0 : i32
    %c0_i32_1 = arith.constant 0 : i32
    return %c0_i32, %c0_i32_0 : i32, i32
  }
  func.func @transform_2(%arg0: i32) -> (i32, i32) {
    %c0_i32 = arith.constant 0 : i32
    %c0_i32_0 = arith.constant 0 : i32
    %c0_i32_1 = arith.constant 0 : i32
    return %c0_i32, %c0_i32_0 : i32, i32
  }
  func.func @transform_3(%arg0: i32) -> (i32, i32) {
    %c0_i32 = arith.constant 0 : i32
    %c0_i32_0 = arith.constant 0 : i32
    %c0_i32_1 = arith.constant 0 : i32
    return %c0_i32, %c0_i32_0 : i32, i32
  }
  func.func @transform_4(%arg0: i32) -> i32 {
    %c0_i32 = arith.constant 0 : i32
    %c0_i32_0 = arith.constant 0 : i32
    return %c0_i32 : i32
  }
  func.func @transform_5(%arg0: i32) -> (i32, i32) {
    %c0_i32 = arith.constant 0 : i32
    %c0_i32_0 = arith.constant 0 : i32
    return %arg0, %c0_i32 : i32, i32
  }
  func.func @transform_6(%arg0: i32) -> (i32, i32) {
    %c0_i32 = arith.constant 0 : i32
    %c0_i32_0 = arith.constant 0 : i32
    return %arg0, %c0_i32 : i32, i32
  }
}

</mosaic_0001>

<llo_original>
// kernel: tpu_custom_call.1
$region0: #{tpu_custom_call.1}
  #allocation0 [shape = 'u32[]', space=smem, size = 0x4, offset = 0x4, fixed_abs, tag = 'smem constant byte address 0x4 - core index']
  #allocation1 [shape = 'u32[144,128]{1,0:T(1,128)}', space=vmem, size = 0x12000, scoped, tag = 'internal scratch']
  #allocation2 [shape = 'f32[1]{0:T(128)S(6)}', space=smem, size = 0x200, scoped, tag = 'scoped memory for tpu_custom_call.1']
  %s0 = inlined_call_operand.hbm [shape: f32[8,8,32], index: 0, kind: input, shape index: {}]
  %s1 = inlined_call_operand.hbm [shape: f32[32,64], index: 1, kind: input, shape index: {}]
  %s2 = inlined_call_operand.vmem [shape: f32[1,64], index: 2, kind: input, shape index: {}]
  %s3 = inlined_call_operand.vmem [shape: f32[1,64], index: 3, kind: input, shape index: {}]
  %s4 = inlined_call_operand.<no memory space> [shape: f32[1], index: 4, kind: input, shape index: {}]
  %s5 = inlined_call_operand.hbm [shape: f32[8,32], index: 5, kind: output, shape index: {0}]
  %s6 = inlined_call_operand.hbm [shape: f32[8,8], index: 6, kind: output, shape index: {1}]
  %7 = xla_tuple %s5, %s6
  %s8 = sld [smem:[#allocation0]]
  $region46: #{tpu_custom_call.1} parent=0
    _
  %s10 = ssub.s32 1, %s8
  %s11 = scalar_select 0, %s10, %s8
  %12 = sst [smem:[#allocation2]] %s4
  $region1: #{tpu_custom_call.1} parent=0
    #allocation3 [shape = 'u8[32768]{0}', space=vmem, size = 0x8000, scoped, tag = 'input window, operand 0, single buffered']
    #allocation4 [shape = 's32[1]{0}', space=sflag, size = 0x4, scoped, tag = 'scoped memory for tpu_custom_call.1']
    #allocation5 [shape = 's32[1]{0}', space=sflag, size = 0x4, scoped, tag = 'scoped memory for tpu_custom_call.1']
    #allocation6 [shape = 'u8[16384]{0}', space=vmem, size = 0x4000, scoped, tag = 'input window, operand 1, single buffered']
    #allocation7 [shape = 's32[1]{0}', space=sflag, size = 0x4, scoped, tag = 'scoped memory for tpu_custom_call.1']
    #allocation8 [shape = 'u8[4096]{0}', space=vmem, size = 0x1000, scoped, tag = 'output window, operand 0, single buffered']
    #allocation9 [shape = 'u8[4096]{0}', space=vmem, size = 0x1000, scoped, tag = 'output window, operand 1, single buffered']
    #allocation10 [shape = 's32[1]{0}', space=sflag, size = 0x4, scoped, tag = 'scoped memory for tpu_custom_call.1']
    %13 = vsyncpa [#allocation4], 0
    %14 = vsyncpa [#allocation7], 0
    %15 = vsyncpa [#allocation5], 0
    %16 = vsyncpa [#allocation10], 0
    // Predicated region
    $region2: #{tpu_custom_call.1} parent=1 // pred_check
      _
    $region3: #{tpu_custom_call.1} parent=1 // pred_check_branch
      %18 = sbr.rel (0) target = $region5
    $region4: #{tpu_custom_call.1} parent=1 // pred_region
      %s20 = ssub.s32 1024, 1024
      %21 = vsyncadd [#allocation4], %s20
      %s22 = sshll.u32 [#allocation3], 4
      %s23 = int_to_ptr.vmem [resolvable:$true] %s22
      %28 = dma.hbm_to_vmem [thread:$0]  %s0, 1024, %s23, [#allocation4], 128, 128, 8
    $region5: #{tpu_custom_call.1} parent=1 // pred_fallthru
      _
    // Predicated region
    $region6: #{tpu_custom_call.1} parent=1 // pred_check
      _
    $region7: #{tpu_custom_call.1} parent=1 // pred_check_branch
      %30 = sbr.rel (0) target = $region9
    $region8: #{tpu_custom_call.1} parent=1 // pred_region
      %s32 = ssub.s32 512, 512
      %33 = vsyncadd [#allocation7], %s32
      %s34 = sshll.u32 [#allocation6], 4
      %s35 = int_to_ptr.vmem [resolvable:$true] %s34
      %40 = dma.hbm_to_vmem [thread:$0]  %s1, 512, %s35, [#allocation7], 128, 128, 8
    $region9: #{tpu_custom_call.1} parent=1 // pred_fallthru
      _
    // Predicated region
    $region10: #{tpu_custom_call.1} parent=1 // pred_check
      _
    $region11: #{tpu_custom_call.1} parent=1 // pred_check_branch
      %42 = sbr.rel (0) target = $region13
    $region12: #{tpu_custom_call.1} parent=1 // pred_region
      _
    $region13: #{tpu_custom_call.1} parent=1 // pred_fallthru
      _
    // Predicated region
    $region14: #{tpu_custom_call.1} parent=1 // pred_check
      _
    $region15: #{tpu_custom_call.1} parent=1 // pred_check_branch
      %44 = sbr.rel (0) target = $region17
    $region16: #{tpu_custom_call.1} parent=1 // pred_region
      _
    $region17: #{tpu_custom_call.1} parent=1 // pred_fallthru
      _
    // Predicated region
    $region18: #{tpu_custom_call.1} parent=1 // pred_check
      _
    $region19: #{tpu_custom_call.1} parent=1 // pred_check_branch
      %46 = sbr.rel (0) target = $region21
    $region20: #{tpu_custom_call.1} parent=1 // pred_region
      _
    $region21: #{tpu_custom_call.1} parent=1 // pred_fallthru
      _
    // Predicated region
    $region22: #{tpu_custom_call.1} parent=1 // pred_check
      _
    $region23: #{tpu_custom_call.1} parent=1 // pred_check_branch
      %48 = sbr.rel (0) target = $region25
    $region24: #{tpu_custom_call.1} parent=1 // pred_region
      %49 = dma.done [#allocation4], 1024
    $region25: #{tpu_custom_call.1} parent=1 // pred_fallthru
      _
    // Predicated region
    $region26: #{tpu_custom_call.1} parent=1 // pred_check
      _
    $region27: #{tpu_custom_call.1} parent=1 // pred_check_branch
      %51 = sbr.rel (0) target = $region29
    $region28: #{tpu_custom_call.1} parent=1 // pred_region
      %52 = dma.done [#allocation7], 512
    $region29: #{tpu_custom_call.1} parent=1 // pred_fallthru
      _
    %v53 = vld [vmem:[#allocation6] sm:$0xff]
    %v54 = vld [vmem:[#allocation6 + $0x8] sm:$0xff]
    %v55 = vld [vmem:[#allocation6 + $0x10] sm:$0xff]
    %v56 = vld [vmem:[#allocation6 + $0x18] sm:$0xff]
    %v57 = vld [vmem:[%s2] sm:$0x1]
    %v58 = vld [vmem:[%s3] sm:$0x1]
    %s59 = sld [smem:[#allocation2]]
    %s60 = smul.u32 0, 8
    %s61 = scalar_lea.vmem [#allocation3], %s60
    %v62 = vld [vmem:[%s61] sm:$0xff]
    %v63 = vld [vmem:[%s61 + $0x8] sm:$0xff]
    %v64 = vld [vmem:[%s61 + $0x10] sm:$0xff]
    %v65 = vld [vmem:[%s61 + $0x18] sm:$0xff]
    %v66 = vld [vmem:[%s61 + $0x20] sm:$0xff]
    %v67 = vld [vmem:[%s61 + $0x28] sm:$0xff]
    %v68 = vld [vmem:[%s61 + $0x30] sm:$0xff]
    %v69 = vld [vmem:[%s61 + $0x38] sm:$0xff]
    %v71 = vlaneseq
    %v72 = vshrl.u32 %v71, 7
    %v73 = vsub.s32 0, %v72
    %v74 = vrot.slane %v57, %v73
    %vm76 = vcmask 261120
    %v78 = vsel %vm76, %v62, 0
    %v81 = vsel %vm76, %v63, 0
    %v84 = vsel %vm76, %v64, 0
    %v87 = vsel %vm76, %v65, 0
    %v90 = vsel %vm76, %v66, 0
    %v93 = vsel %vm76, %v67, 0
    %v96 = vsel %vm76, %v68, 0
    %v99 = vsel %vm76, %v69, 0
    %101 = vmatprep.subr.mxu0 0.0
    %102 = vmatpush1.msra.mxu0 %v53
    %103 = vmatprep.subr.mxu0 0.0
    %104 = vmatpush1.msra.mxu0 %v54
    %105 = vmatprep.subr.mxu0 0.0
    %106 = vmatpush1.msra.mxu0 %v55
    %107 = vmatprep.subr.mxu0 0.0
    %108 = vmatpush1.msra.mxu0 %v56
    %109 = vmatprep.subr.mxu0 0.0
    %110 = vmatpush1.msra.mxu0 0.0
    %111 = vmatprep.subr.mxu0 0.0
    %112 = vmatpush1.msra.mxu0 0.0
    %113 = vmatprep.subr.mxu0 0.0
    %114 = vmatpush1.msra.mxu0 0.0
    %115 = vmatprep.subr.mxu0 0.0
    %116 = vmatpush1.msra.mxu0 0.0
    %117 = vmatprep.subr.mxu0 0.0
    %118 = vmatpush1.msra.mxu0 0.0
    %119 = vmatprep.subr.mxu0 0.0
    %120 = vmatpush1.msra.mxu0 0.0
    %121 = vmatprep.subr.mxu0 0.0
    %122 = vmatpush1.msra.mxu0 0.0
    %123 = vmatprep.subr.mxu0 0.0
    %124 = vmatpush1.msra.mxu0 0.0
    %125 = vmatprep.subr.mxu0 0.0
    %126 = vmatpush1.msra.mxu0 0.0
    %127 = vmatprep.subr.mxu0 0.0
    %128 = vmatpush1.msra.mxu0 0.0
    %129 = vmatprep.subr.mxu0 0.0
    %130 = vmatpush1.msra.mxu0 0.0
    %131 = vmatprep.subr.mxu0 0.0
    %132 = vmatpush1.msra.mxu0 0.0
    %133 = vmatprep.subr.mxu0 0.0
    %134 = vmatpush1.msra.mxu0 0.0
    %135 = vmatprep.subr.mxu0 0.0
    %136 = vmatpush1.msra.mxu0 0.0
    %137 = vmatprep.subr.mxu0 0.0
    %138 = vmatpush1.msra.mxu0 0.0
    %139 = vmatprep.subr.mxu0 0.0
    %140 = vmatpush1.msra.mxu0 0.0
    %141 = vmatprep.subr.mxu0 0.0
    %142 = vmatpush1.msra.mxu0 0.0
    %143 = vmatprep.subr.mxu0 0.0
    %144 = vmatpush1.msra.mxu0 0.0
    %145 = vmatprep.subr.mxu0 0.0
    %146 = vmatpush1.msra.mxu0 0.0
    %147 = vmatprep.subr.mxu0 0.0
    %148 = vmatpush1.msra.mxu0 0.0
    %149 = vmatprep.subr.mxu0 0.0
    %150 = vmatpush1.msra.mxu0 0.0
    %151 = vmatprep.subr.mxu0 0.0
    %152 = vmatpush1.msra.mxu0 0.0
    %153 = vmatprep.subr.mxu0 0.0
    %154 = vmatpush1.msra.mxu0 0.0
    %155 = vmatprep.subr.mxu0 0.0
    %156 = vmatpush1.msra.mxu0 0.0
    %157 = vmatprep.subr.mxu0 0.0
    %158 = vmatpush1.msra.mxu0 0.0
    %159 = vmatprep.subr.mxu0 0.0
    %160 = vmatpush1.msra.mxu0 0.0
    %161 = vmatprep.subr.mxu0 0.0
    %162 = vmatpush1.msra.mxu0 0.0
    %163 = vmatprep.subr.mxu0 0.0
    %164 = vmatpush1.msra.mxu0 0.0
    %165 = vmatprep.mubr.f32.mxu0 0.0
    %166 = vmatmul.mubr.f32.gmra.mrb[0].mxu0 %v78
    %v167 = vpop.f32.mrb[0].mxu0
    %v168 = vadd.f32 %v74, %v167
    %v169 = vpop.f32.mrb[0].mxu0
    %170 = vmatprep.mubr.f32.mxu0 0.0
    %171 = vmatmul.mubr.f32.gmra.mrb[0].mxu0 %v81
    %v172 = vpop.f32.mrb[0].mxu0
    %v173 = vadd.f32 %v74, %v172
    %v174 = vpop.f32.mrb[0].mxu0
    %175 = vmatprep.mubr.f32.mxu0 0.0
    %176 = vmatmul.mubr.f32.gmra.mrb[0].mxu0 %v84
    %v177 = vpop.f32.mrb[0].mxu0
    %v178 = vadd.f32 %v74, %v177
    %v179 = vpop.f32.mrb[0].mxu0
    %180 = vmatprep.mubr.f32.mxu0 0.0
    %181 = vmatmul.mubr.f32.gmra.mrb[0].mxu0 %v87
    %v182 = vpop.f32.mrb[0].mxu0
    %v183 = vadd.f32 %v74, %v182
    %v184 = vpop.f32.mrb[0].mxu0
    %185 = vmatprep.mubr.f32.mxu0 0.0
    %186 = vmatmul.mubr.f32.gmra.mrb[0].mxu0 %v90
    %v187 = vpop.f32.mrb[0].mxu0
    %v188 = vadd.f32 %v74, %v187
    %v189 = vpop.f32.mrb[0].mxu0
    %190 = vmatprep.mubr.f32.mxu0 0.0
    %191 = vmatmul.mubr.f32.gmra.mrb[0].mxu0 %v93
    %v192 = vpop.f32.mrb[0].mxu0
    %v193 = vadd.f32 %v74, %v192
    %v194 = vpop.f32.mrb[0].mxu0
    %195 = vmatprep.mubr.f32.mxu0 0.0
    %196 = vmatmul.mubr.f32.gmra.mrb[0].mxu0 %v96
    %v197 = vpop.f32.mrb[0].mxu0
    %v198 = vadd.f32 %v74, %v197
    %v199 = vpop.f32.mrb[0].mxu0
    %200 = vmatprep.mubr.f32.mxu0 0.0
    %201 = vmatmul.mubr.f32.gmra.mrb[0].mxu0 %v99
    %v202 = vpop.f32.mrb[0].mxu0
    %v203 = vadd.f32 %v74, %v202
    %v204 = vpop.f32.mrb[0].mxu0
    %205 = vdwg.mxu0
    %v206 = vmax.f32 %v168, 0.0
    %v207 = vmax.f32 %v173, 0.0
    %v208 = vmax.f32 %v178, 0.0
    %v209 = vmax.f32 %v183, 0.0
    %v210 = vmax.f32 %v188, 0.0
    %v211 = vmax.f32 %v193, 0.0
    %v212 = vmax.f32 %v198, 0.0
    %v213 = vmax.f32 %v203, 0.0
    %v215 = vlaneseq
    %v216 = vshrl.u32 %v215, 7
    %v217 = vsub.s32 0, %v216
    %v218 = vrot.slane %v58, %v217
    %v220 = vmul.f32 %v206, %v218
    %v221 = vmul.f32 %v207, %v218
    %v222 = vmul.f32 %v208, %v218
    %v223 = vmul.f32 %v209, %v218
    %v224 = vmul.f32 %v210, %v218
    %v225 = vmul.f32 %v211, %v218
    %v226 = vmul.f32 %v212, %v218
    %v227 = vmul.f32 %v213, %v218
    %vm228 = vcmask 523264
    %v229 = vsel %vm228, %v220, 0.0
    %230 = vadd.xlane.f32.xlu0 %v229
    %v231 = vpop.xlane.xlu0 %230
    %v232 = vsel %vm228, %v221, 0.0
    %233 = vadd.xlane.f32.xlu0 %v232
    %v234 = vpop.xlane.xlu0 %233
    %v235 = vsel %vm228, %v222, 0.0
    %236 = vadd.xlane.f32.xlu0 %v235
    %v237 = vpop.xlane.xlu0 %236
    %v238 = vsel %vm228, %v223, 0.0
    %239 = vadd.xlane.f32.xlu0 %v238
    %v240 = vpop.xlane.xlu0 %239
    %v241 = vsel %vm228, %v224, 0.0
    %242 = vadd.xlane.f32.xlu0 %v241
    %v243 = vpop.xlane.xlu0 %242
    %v244 = vsel %vm228, %v225, 0.0
    %245 = vadd.xlane.f32.xlu0 %v244
    %v246 = vpop.xlane.xlu0 %245
    %v247 = vsel %vm228, %v226, 0.0
    %248 = vadd.xlane.f32.xlu0 %v247
    %v249 = vpop.xlane.xlu0 %248
    %v250 = vsel %vm228, %v227, 0.0
    %251 = vadd.xlane.f32.xlu0 %v250
    %v252 = vpop.xlane.xlu0 %251
    %v253 = vstv %s59
    %v254 = vadd.f32 %v231, %v253
    %v255 = vadd.f32 %v234, %v253
    %v256 = vadd.f32 %v237, %v253
    %v257 = vadd.f32 %v240, %v253
    %v258 = vadd.f32 %v243, %v253
    %v259 = vadd.f32 %v246, %v253
    %v260 = vadd.f32 %v249, %v253
    %v261 = vadd.f32 %v252, %v253
    %v270 = vlaneseq
    %v271 = vand.u32 %v270, 127
    %v272 = vlaneseq
    %v273 = vshrl.u32 %v272, 7
    %v274 = vsub.s32 %v271, %v273
    %v275 = vrot.slane %v254, %v274
    %v276 = vlaneseq
    %v277 = vshrl.u32 %v276, 7
    %v278 = vsub.s32 %v271, %v277
    %v279 = vrot.slane %v255, %v278
    %v280 = vlaneseq
    %v281 = vshrl.u32 %v280, 7
    %v282 = vsub.s32 %v271, %v281
    %v283 = vrot.slane %v256, %v282
    %v284 = vlaneseq
    %v285 = vshrl.u32 %v284, 7
    %v286 = vsub.s32 %v271, %v285
    %v287 = vrot.slane %v257, %v286
    %v288 = vlaneseq
    %v289 = vshrl.u32 %v288, 7
    %v290 = vsub.s32 %v271, %v289
    %v291 = vrot.slane %v258, %v290
    %v292 = vlaneseq
    %v293 = vshrl.u32 %v292, 7
    %v294 = vsub.s32 %v271, %v293
    %v295 = vrot.slane %v259, %v294
    %v296 = vlaneseq
    %v297 = vshrl.u32 %v296, 7
    %v298 = vsub.s32 %v271, %v297
    %v299 = vrot.slane %v260, %v298
    %v300 = vlaneseq
    %v301 = vshrl.u32 %v300, 7
    %v302 = vsub.s32 %v271, %v301
    %v303 = vrot.slane %v261, %v302
    %vm304 = vcmask 1041409
    %v305 = vsel %vm304, %v279, %v275
    %vm306 = vcmask 1042434
    %v307 = vsel %vm306, %v283, %v305
    %vm308 = vcmask 1043459
    %v309 = vsel %vm308, %v287, %v307
    %vm310 = vcmask 1044484
    %v311 = vsel %vm310, %v291, %v309
    %vm312 = vcmask 1045509
    %v313 = vsel %vm312, %v295, %v311
    %vm314 = vcmask 1046534
    %v315 = vsel %vm314, %v299, %v313
    %vm316 = vcmask 1047559
    %v317 = vsel %vm316, %v303, %v315
    %vm319 = vcmask 64512
    %v320 = vsel %vm319, %v317, -inf
    %321 = vmax.xlane.f32.xlu0 %v320
    %v322 = vpop.xlane.xlu0 %321
    %v324 = vlaneseq
    %v325 = vshrl.u32 %v324, 7
    %v326 = vsub.s32 0, %v325
    %v327 = vrot.slane %v322, %v326
    %v328 = vlaneseq
    %v329 = vshrl.u32 %v328, 7
    %v330 = vsub.s32 1, %v329
    %v331 = vrot.slane %v322, %v330
    %v332 = vlaneseq
    %v333 = vshrl.u32 %v332, 7
    %v334 = vsub.s32 2, %v333
    %v335 = vrot.slane %v322, %v334
    %v336 = vlaneseq
    %v337 = vshrl.u32 %v336, 7
    %v338 = vsub.s32 3, %v337
    %v339 = vrot.slane %v322, %v338
    %v340 = vlaneseq
    %v341 = vshrl.u32 %v340, 7
    %v342 = vsub.s32 4, %v341
    %v343 = vrot.slane %v322, %v342
    %v344 = vlaneseq
    %v345 = vshrl.u32 %v344, 7
    %v346 = vsub.s32 5, %v345
    %v347 = vrot.slane %v322, %v346
    %v348 = vlaneseq
    %v349 = vshrl.u32 %v348, 7
    %v350 = vsub.s32 6, %v349
    %v351 = vrot.slane %v322, %v350
    %v352 = vlaneseq
    %v353 = vshrl.u32 %v352, 7
    %v354 = vsub.s32 7, %v353
    %v355 = vrot.slane %v322, %v354
    %v364 = vsub.f32 %v254, %v327
    %v365 = vsub.f32 %v255, %v331
    %v366 = vsub.f32 %v256, %v335
    %v367 = vsub.f32 %v257, %v339
    %v368 = vsub.f32 %v258, %v343
    %v369 = vsub.f32 %v259, %v347
    %v370 = vsub.f32 %v260, %v351
    %v371 = vsub.f32 %v261, %v355
    %v372 = vmul.f32 %v364, 1.442695
    %v373 = vpow.pop %v372
    %v374 = vmul.f32 %v365, 1.442695
    %v375 = vpow.pop %v374
    %v376 = vmul.f32 %v366, 1.442695
    %v377 = vpow.pop %v376
    %v378 = vmul.f32 %v367, 1.442695
    %v379 = vpow.pop %v378
    %v380 = vmul.f32 %v368, 1.442695
    %v381 = vpow.pop %v380
    %v382 = vmul.f32 %v369, 1.442695
    %v383 = vpow.pop %v382
    %v384 = vmul.f32 %v370, 1.442695
    %v385 = vpow.pop %v384
    %v386 = vmul.f32 %v371, 1.442695
    %v387 = vpow.pop %v386
    %396 = vset.pattern.permute.xlu0 0
    %397 = vperm.xlu0 %396, %v373
    %v398 = vpop.permute.xlu0 %397
    %399 = vset.pattern.permute.xlu0 0
    %400 = vperm.xlu0 %399, %v375
    %v401 = vpop.permute.xlu0 %400
    %402 = vset.pattern.permute.xlu0 0
    %403 = vperm.xlu0 %402, %v377
    %v404 = vpop.permute.xlu0 %403
    %405 = vset.pattern.permute.xlu0 0
    %406 = vperm.xlu0 %405, %v379
    %v407 = vpop.permute.xlu0 %406
    %408 = vset.pattern.permute.xlu0 0
    %409 = vperm.xlu0 %408, %v381
    %v410 = vpop.permute.xlu0 %409
    %411 = vset.pattern.permute.xlu0 0
    %412 = vperm.xlu0 %411, %v383
    %v413 = vpop.permute.xlu0 %412
    %414 = vset.pattern.permute.xlu0 0
    %415 = vperm.xlu0 %414, %v385
    %v416 = vpop.permute.xlu0 %415
    %417 = vset.pattern.permute.xlu0 0
    %418 = vperm.xlu0 %417, %v387
    %v419 = vpop.permute.xlu0 %418
    %v420 = vlaneseq
    %v421 = vshrl.u32 %v420, 7
    %v422 = vsub.s32 %v271, %v421
    %v423 = vrot.slane %v398, %v422
    %v424 = vlaneseq
    %v425 = vshrl.u32 %v424, 7
    %v426 = vsub.s32 %v271, %v425
    %v427 = vrot.slane %v401, %v426
    %v428 = vlaneseq
    %v429 = vshrl.u32 %v428, 7
    %v430 = vsub.s32 %v271, %v429
    %v431 = vrot.slane %v404, %v430
    %v432 = vlaneseq
    %v433 = vshrl.u32 %v432, 7
    %v434 = vsub.s32 %v271, %v433
    %v435 = vrot.slane %v407, %v434
    %v436 = vlaneseq
    %v437 = vshrl.u32 %v436, 7
    %v438 = vsub.s32 %v271, %v437
    %v439 = vrot.slane %v410, %v438
    %v440 = vlaneseq
    %v441 = vshrl.u32 %v440, 7
    %v442 = vsub.s32 %v271, %v441
    %v443 = vrot.slane %v413, %v442
    %v444 = vlaneseq
    %v445 = vshrl.u32 %v444, 7
    %v446 = vsub.s32 %v271, %v445
    %v447 = vrot.slane %v416, %v446
    %v448 = vlaneseq
    %v449 = vshrl.u32 %v448, 7
    %v450 = vsub.s32 %v271, %v449
    %v451 = vrot.slane %v419, %v450
    %v452 = vsel %vm304, %v427, %v423
    %v453 = vsel %vm306, %v431, %v452
    %v454 = vsel %vm308, %v435, %v453
    %v455 = vsel %vm310, %v439, %v454
    %v456 = vsel %vm312, %v443, %v455
    %v457 = vsel %vm314, %v447, %v456
    %v458 = vsel %vm316, %v451, %v457
    %v460 = vsel %vm319, %v458, 0.0
    %461 = vadd.xlane.f32.xlu0 %v460
    %v462 = vpop.xlane.xlu0 %461
    %v464 = vlaneseq
    %v465 = vshrl.u32 %v464, 7
    %v466 = vsub.s32 0, %v465
    %v467 = vrot.slane %v462, %v466
    %v468 = vlaneseq
    %v469 = vshrl.u32 %v468, 7
    %v470 = vsub.s32 1, %v469
    %v471 = vrot.slane %v462, %v470
    %v472 = vlaneseq
    %v473 = vshrl.u32 %v472, 7
    %v474 = vsub.s32 2, %v473
    %v475 = vrot.slane %v462, %v474
    %v476 = vlaneseq
    %v477 = vshrl.u32 %v476, 7
    %v478 = vsub.s32 3, %v477
    %v479 = vrot.slane %v462, %v478
    %v480 = vlaneseq
    %v481 = vshrl.u32 %v480, 7
    %v482 = vsub.s32 4, %v481
    %v483 = vrot.slane %v462, %v482
    %v484 = vlaneseq
    %v485 = vshrl.u32 %v484, 7
    %v486 = vsub.s32 5, %v485
    %v487 = vrot.slane %v462, %v486
    %v488 = vlaneseq
    %v489 = vshrl.u32 %v488, 7
    %v490 = vsub.s32 6, %v489
    %v491 = vrot.slane %v462, %v490
    %v492 = vlaneseq
    %v493 = vshrl.u32 %v492, 7
    %v494 = vsub.s32 7, %v493
    %v495 = vrot.slane %v462, %v494
    %v504 = vrcp.pop %v467
    %v505 = vmul.f32 %v373, %v504
    %v506 = vrcp.pop %v471
    %v507 = vmul.f32 %v375, %v506
    %v508 = vrcp.pop %v475
    %v509 = vmul.f32 %v377, %v508
    %v510 = vrcp.pop %v479
    %v511 = vmul.f32 %v379, %v510
    %v512 = vrcp.pop %v483
    %v513 = vmul.f32 %v381, %v512
    %v514 = vrcp.pop %v487
    %v515 = vmul.f32 %v383, %v514
    %v516 = vrcp.pop %v491
    %v517 = vmul.f32 %v385, %v516
    %v518 = vrcp.pop %v495
    %v519 = vmul.f32 %v387, %v518
    %521 = vset.pattern.permute.xlu0 0
    %522 = vperm.xlu0 %521, %v505
    %v523 = vpop.permute.xlu0 %522
    %526 = vset.pattern.permute.xlu0 0
    %527 = vperm.xlu0 %526, %v507
    %v528 = vpop.permute.xlu0 %527
    %531 = vset.pattern.permute.xlu0 0
    %532 = vperm.xlu0 %531, %v509
    %v533 = vpop.permute.xlu0 %532
    %536 = vset.pattern.permute.xlu0 0
    %537 = vperm.xlu0 %536, %v511
    %v538 = vpop.permute.xlu0 %537
    %541 = vset.pattern.permute.xlu0 0
    %542 = vperm.xlu0 %541, %v513
    %v543 = vpop.permute.xlu0 %542
    %546 = vset.pattern.permute.xlu0 0
    %547 = vperm.xlu0 %546, %v515
    %v548 = vpop.permute.xlu0 %547
    %551 = vset.pattern.permute.xlu0 0
    %552 = vperm.xlu0 %551, %v517
    %v553 = vpop.permute.xlu0 %552
    %556 = vset.pattern.permute.xlu0 0
    %557 = vperm.xlu0 %556, %v519
    %v558 = vpop.permute.xlu0 %557
    %v560 = vmul.f32 %v523, %v62
    %v561 = vmul.f32 %v528, %v63
    %v562 = vmul.f32 %v533, %v64
    %v563 = vmul.f32 %v538, %v65
    %v564 = vmul.f32 %v543, %v66
    %v565 = vmul.f32 %v548, %v67
    %v566 = vmul.f32 %v553, %v68
    %v567 = vmul.f32 %v558, %v69
    %v568 = vsel %vm76, %v560, 0.0
    %v569 = vrot.slane %v568, 4
    %v570 = vadd.f32 %v568, %v569
    %v571 = vrot.slane %v570, 2
    %v572 = vadd.f32 %v570, %v571
    %v573 = vrot.slane %v572, 1
    %v574 = vadd.f32 %v572, %v573
    %v575 = vsel %vm76, %v561, 0.0
    %v576 = vrot.slane %v575, 4
    %v577 = vadd.f32 %v575, %v576
    %v578 = vrot.slane %v577, 2
    %v579 = vadd.f32 %v577, %v578
    %v580 = vrot.slane %v579, 1
    %v581 = vadd.f32 %v579, %v580
    %v582 = vsel %vm76, %v562, 0.0
    %v583 = vrot.slane %v582, 4
    %v584 = vadd.f32 %v582, %v583
    %v585 = vrot.slane %v584, 2
    %v586 = vadd.f32 %v584, %v585
    %v587 = vrot.slane %v586, 1
    %v588 = vadd.f32 %v586, %v587
    %v589 = vsel %vm76, %v563, 0.0
    %v590 = vrot.slane %v589, 4
    %v591 = vadd.f32 %v589, %v590
    %v592 = vrot.slane %v591, 2
    %v593 = vadd.f32 %v591, %v592
    %v594 = vrot.slane %v593, 1
    %v595 = vadd.f32 %v593, %v594
    %v596 = vsel %vm76, %v564, 0.0
    %v597 = vrot.slane %v596, 4
    %v598 = vadd.f32 %v596, %v597
    %v599 = vrot.slane %v598, 2
    %v600 = vadd.f32 %v598, %v599
    %v601 = vrot.slane %v600, 1
    %v602 = vadd.f32 %v600, %v601
    %v603 = vsel %vm76, %v565, 0.0
    %v604 = vrot.slane %v603, 4
    %v605 = vadd.f32 %v603, %v604
    %v606 = vrot.slane %v605, 2
    %v607 = vadd.f32 %v605, %v606
    %v608 = vrot.slane %v607, 1
    %v609 = vadd.f32 %v607, %v608
    %v610 = vsel %vm76, %v566, 0.0
    %v611 = vrot.slane %v610, 4
    %v612 = vadd.f32 %v610, %v611
    %v613 = vrot.slane %v612, 2
    %v614 = vadd.f32 %v612, %v613
    %v615 = vrot.slane %v614, 1
    %v616 = vadd.f32 %v614, %v615
    %v617 = vsel %vm76, %v567, 0.0
    %v618 = vrot.slane %v617, 4
    %v619 = vadd.f32 %v617, %v618
    %v620 = vrot.slane %v619, 2
    %v621 = vadd.f32 %v619, %v620
    %v622 = vrot.slane %v621, 1
    %v623 = vadd.f32 %v621, %v622
    %v632 = vsel %vm304, %v581, %v574
    %v633 = vsel %vm306, %v588, %v632
    %v634 = vsel %vm308, %v595, %v633
    %v635 = vsel %vm310, %v602, %v634
    %v636 = vsel %vm312, %v609, %v635
    %v637 = vsel %vm314, %v616, %v636
    %v638 = vsel %vm316, %v623, %v637
    %640 = vst.msk [vmem:[#allocation8] sm:$0xff] %vm76, %v638
    %v641 = vlaneseq
    %v642 = vshrl.u32 %v641, 7
    %v643 = vsub.s32 %v271, %v642
    %v644 = vrot.slane %v523, %v643
    %v645 = vlaneseq
    %v646 = vshrl.u32 %v645, 7
    %v647 = vsub.s32 %v271, %v646
    %v648 = vrot.slane %v528, %v647
    %v649 = vlaneseq
    %v650 = vshrl.u32 %v649, 7
    %v651 = vsub.s32 %v271, %v650
    %v652 = vrot.slane %v533, %v651
    %v653 = vlaneseq
    %v654 = vshrl.u32 %v653, 7
    %v655 = vsub.s32 %v271, %v654
    %v656 = vrot.slane %v538, %v655
    %v657 = vlaneseq
    %v658 = vshrl.u32 %v657, 7
    %v659 = vsub.s32 %v271, %v658
    %v660 = vrot.slane %v543, %v659
    %v661 = vlaneseq
    %v662 = vshrl.u32 %v661, 7
    %v663 = vsub.s32 %v271, %v662
    %v664 = vrot.slane %v548, %v663
    %v665 = vlaneseq
    %v666 = vshrl.u32 %v665, 7
    %v667 = vsub.s32 %v271, %v666
    %v668 = vrot.slane %v553, %v667
    %v669 = vlaneseq
    %v670 = vshrl.u32 %v669, 7
    %v671 = vsub.s32 %v271, %v670
    %v672 = vrot.slane %v558, %v671
    %v673 = vsel %vm304, %v648, %v644
    %v674 = vsel %vm306, %v652, %v673
    %v675 = vsel %vm308, %v656, %v674
    %v676 = vsel %vm310, %v660, %v675
    %v677 = vsel %vm312, %v664, %v676
    %v678 = vsel %vm314, %v668, %v677
    %v679 = vsel %vm316, %v672, %v678
    %681 = vst.msk [vmem:[#allocation9] sm:$0xff] %vm319, %v679
    // Predicated region
    $region30: #{tpu_custom_call.1} parent=1 // pred_check
      _
    $region31: #{tpu_custom_call.1} parent=1 // pred_check_branch
      %683 = sbr.rel (0) target = $region33
    $region32: #{tpu_custom_call.1} parent=1 // pred_region
      %s685 = ssub.s32 128, 128
      %686 = vsyncadd [#allocation5], %s685
      %s688 = sshll.u32 [#allocation8], 4
      %s689 = int_to_ptr.vmem [resolvable:$true] %s688
      %691 = dma.vmem_to_hbm [thread:$0]  %s689, 128, %s5, [#allocation5]
    $region33: #{tpu_custom_call.1} parent=1 // pred_fallthru
      _
    // Predicated region
    $region34: #{tpu_custom_call.1} parent=1 // pred_check
      _
    $region35: #{tpu_custom_call.1} parent=1 // pred_check_branch
      %693 = sbr.rel (0) target = $region37
    $region36: #{tpu_custom_call.1} parent=1 // pred_region
      %s695 = ssub.s32 128, 128
      %696 = vsyncadd [#allocation10], %s695
      %s698 = sshll.u32 [#allocation9], 4
      %s699 = int_to_ptr.vmem [resolvable:$true] %s698
      %701 = dma.vmem_to_hbm [thread:$0]  %s699, 128, %s6, [#allocation10]
    $region37: #{tpu_custom_call.1} parent=1 // pred_fallthru
      _
    // Predicated region
    $region38: #{tpu_custom_call.1} parent=1 // pred_check
      _
    $region39: #{tpu_custom_call.1} parent=1 // pred_check_branch
      %703 = sbr.rel (0) target = $region41
    $region40: #{tpu_custom_call.1} parent=1 // pred_region
      %704 = dma.done [#allocation5], 128
    $region41: #{tpu_custom_call.1} parent=1 // pred_fallthru
      _
    // Predicated region
    $region42: #{tpu_custom_call.1} parent=1 // pred_check
      _
    $region43: #{tpu_custom_call.1} parent=1 // pred_check_branch
      %706 = sbr.rel (0) target = $region45
    $region44: #{tpu_custom_call.1} parent=1 // pred_region
      %707 = dma.done [#allocation10], 128
    $region45: #{tpu_custom_call.1} parent=1 // pred_fallthru
      _
    %708 = vsyncpa [#allocation4], 1
    %709 = vsyncpa [#allocation7], 1
    %710 = vsyncpa [#allocation5], 1
    %711 = vsyncpa [#allocation10], 1

</llo_original>
